<compile_context>
chip_gen: v7x
topology: tpu7x:2x2x1
jax: 0.10.0
libtpu: 0.0.40
codegen_flags: <defaults>
</compile_context>

<pallas_src>
import functools

import jax
import jax.numpy as jnp
from jax.experimental import pallas as pl
from jax.experimental.pallas import tpu as pltpu

LANE = 128          # vreg lane width
SUBLANE_BF16 = 16   # bf16 sublane packing -> keep batch tile a multiple of 16
NEG_INF = -1e30     # bias for padded action lanes -> softmax prob exactly 0


def _round_up(x, m):
    return (x + m - 1) // m * m


def _pick_tile(batch, tm_request):
    """Pick the batch-tile size.

    Big enough to amortize the ~0.35 us per-grid-step overhead (default request
    512), never larger than the (rounded) batch, and split into >= 2 tiles when
    the batch permits so v7x's two TensorCores both get work along the
    "parallel" batch axis (harmless on single-TC v5e/v6e).
    """
    batch = max(int(batch), 1)
    tm = min(int(tm_request), _round_up(batch, SUBLANE_BF16))
    tm = max(SUBLANE_BF16, _round_up(tm, SUBLANE_BF16))
    if _round_up(batch, tm) // tm < 2 and batch >= 2 * SUBLANE_BF16:
        tm = _round_up(-(-batch // 2), SUBLANE_BF16)   # ceil(batch/2), rounded
    return tm


def policy_net_kernel(x_ref, w1_ref, b1_ref, w2_ref, b2_ref, w3_ref, b3_ref,
                      out_ref):
    """One batch tile: fc1 (f32) + fc2/fc3 (bf16 MXU, f32 acc) + stable softmax.

    x_ref:  (TM, state_dim)  f32   (feature axis unpadded)
    w1_ref: (state_dim, H_PAD) f32 ; w2_ref: (H_PAD, H_PAD) bf16
    w3_ref: (H_PAD, A_PAD)   bf16
    b*_ref: (1, N_PAD)       f32   (b3's padded lanes hold NEG_INF)
    out_ref:(TM, A_PAD)      bf16  (lane-dense store; real probs in [:, :action_dim])
    """
    x = x_ref[...]

    # fc1 + ReLU — tiny unpadded K, keep it in f32 (no bf16 small-K packing).
    h1 = jnp.dot(x, w1_ref[...], preferred_element_type=jnp.float32)
    h1 = jnp.maximum(h1 + b1_ref[...], 0.0)

    # fc2 + ReLU — bf16 MXU inputs, f32 accumulation.
    h2 = jnp.dot(h1.astype(jnp.bfloat16), w2_ref[...],
                 preferred_element_type=jnp.float32)
    h2 = jnp.maximum(h2 + b2_ref[...], 0.0)

    # fc3 logits; padded action lanes pick up NEG_INF from b3 -> exp() == 0.
    logits = jnp.dot(h2.astype(jnp.bfloat16), w3_ref[...],
                     preferred_element_type=jnp.float32)
    logits = logits + b3_ref[...]

    # Numerically-stable softmax over the (padded) action axis. Exact divide:
    # the kernel is memory-bound, so the extra VALU work is free and rows sum
    # to 1 up to bf16 output rounding only.
    m = jnp.max(logits, axis=-1, keepdims=True)
    e = jnp.exp(logits - m)
    denom = jnp.sum(e, axis=-1, keepdims=True)
    out_ref[...] = (e / denom).astype(out_ref.dtype)


def prepare_params(params):
    """One-time padding / casting of the weights (hoist out of the forward path).

    w1 stays f32 (tiny: state_dim rows); w2/w3 become 128-padded bf16 for the
    MXU; biases are f32 with b3's padded action lanes set to NEG_INF so softmax
    gives them exactly zero probability.
    """
    w1, b1, w2, b2, w3, b3 = params
    state_dim, hidden_dim = w1.shape
    action_dim = w3.shape[1]
    h_pad = _round_up(hidden_dim, LANE)
    a_pad = _round_up(action_dim, LANE)

    w1_p = jnp.zeros((state_dim, h_pad), jnp.float32
                     ).at[:, :hidden_dim].set(w1.astype(jnp.float32))
    w2_p = jnp.zeros((h_pad, h_pad), jnp.bfloat16
                     ).at[:hidden_dim, :hidden_dim].set(w2.astype(jnp.bfloat16))
    w3_p = jnp.zeros((h_pad, a_pad), jnp.bfloat16
                     ).at[:hidden_dim, :action_dim].set(w3.astype(jnp.bfloat16))
    b1_p = jnp.zeros((1, h_pad), jnp.float32).at[:, :hidden_dim].set(
        b1.reshape(1, -1).astype(jnp.float32))
    b2_p = jnp.zeros((1, h_pad), jnp.float32).at[:, :hidden_dim].set(
        b2.reshape(1, -1).astype(jnp.float32))
    b3_p = jnp.full((1, a_pad), NEG_INF, jnp.float32).at[:, :action_dim].set(
        b3.reshape(1, -1).astype(jnp.float32))
    return (w1_p, b1_p, w2_p, b2_p, w3_p, b3_p)


@functools.partial(jax.jit, static_argnames=("action_dim", "tm"))
def policy_net_forward(x, prepared, *, action_dim, tm=512):
    """Forward pass on prepared (padded) params. Returns bf16 probabilities."""
    w1_p, b1_p, w2_p, b2_p, w3_p, b3_p = prepared
    batch, state_dim = x.shape
    h_pad = w1_p.shape[1]
    a_pad = w3_p.shape[1]

    tm = _pick_tile(batch, tm)
    b_pad = _round_up(max(batch, 1), tm)

    # Only the batch axis is padded (fused here under jit); features stay unpadded.
    x_f32 = x.astype(jnp.float32)
    if b_pad != batch:
        x_f32 = jnp.pad(x_f32, ((0, b_pad - batch), (0, 0)))

    grid = (b_pad // tm,)
    x_spec = pl.BlockSpec((tm, state_dim), lambda i: (i, 0))
    out_spec = pl.BlockSpec((tm, a_pad), lambda i: (i, 0))

    def resident(shape):
        # Same block every grid step; single-buffered (no point double-buffering
        # a block that never changes — halves weight VMEM residency).
        return pl.BlockSpec(shape, lambda i: (0, 0), pipeline_mode=pl.Buffered(1))

    # Cost estimate reflects the work the kernel actually does (padded dims).
    flops = 2 * b_pad * (state_dim * h_pad + h_pad * h_pad + h_pad * a_pad)
    bytes_accessed = (
        x_f32.size * 4                       # x read (f32, unpadded features)
        + w1_p.size * 4 + (w2_p.size + w3_p.size) * 2
        + (b1_p.size + b2_p.size + b3_p.size) * 4
        + b_pad * a_pad * 2)                 # bf16 output writeback

    # VMEM footprint: x/out double-buffers + single-buffered weights + f32
    # intermediates.  Only override the scoped limit when it would exceed
    # v5e's 16 MiB default (cap well under v7x's 64 MiB physical).
    vmem_bytes = (2 * (tm * state_dim * 4 + tm * a_pad * 2)
                  + w1_p.size * 4 + (w2_p.size + w3_p.size) * 2
                  + (b1_p.size + b2_p.size + b3_p.size) * 4
                  + 4 * tm * h_pad * 4)
    vmem_limit = None
    if vmem_bytes > 12 * 1024 * 1024:
        vmem_limit = int(min(2 * vmem_bytes, 48 * 1024 * 1024))

    out_padded = pl.pallas_call(
        policy_net_kernel,
        out_shape=jax.ShapeDtypeStruct((b_pad, a_pad), jnp.bfloat16),
        grid=grid,
        in_specs=[
            x_spec,
            resident((state_dim, h_pad)), resident((1, h_pad)),
            resident((h_pad, h_pad)), resident((1, h_pad)),
            resident((h_pad, a_pad)), resident((1, a_pad)),
        ],
        out_specs=out_spec,
        compiler_params=pltpu.CompilerParams(
            dimension_semantics=("parallel",),
            vmem_limit_bytes=vmem_limit),
        cost_estimate=pl.CostEstimate(
            flops=flops,
            transcendentals=b_pad * a_pad,
            bytes_accessed=bytes_accessed),
    )(x_f32, w1_p, b1_p, w2_p, b2_p, w3_p, b3_p)

    return out_padded[:batch, :action_dim]


def init_params(key, state_dim, hidden_dim, action_dim):
    """Mimics torch.nn.Linear's U(-1/sqrt(fan_in), 1/sqrt(fan_in)) init.

    Weights are stored as (in_features, out_features) — transposed vs torch's
    (out, in) — so the kernel computes x @ W + b (same math as x @ W.T + b).
    """
    ks = jax.random.split(key, 6)

    def linear(kw, kb, fan_in, fan_out):
        bound = 1.0 / jnp.sqrt(jnp.float32(fan_in))
        w = jax.random.uniform(kw, (fan_in, fan_out), jnp.float32, -bound, bound)
        b = jax.random.uniform(kb, (fan_out,), jnp.float32, -bound, bound)
        return w, b

    w1, b1 = linear(ks[0], ks[1], state_dim, hidden_dim)
    w2, b2 = linear(ks[2], ks[3], hidden_dim, hidden_dim)
    w3, b3 = linear(ks[4], ks[5], hidden_dim, action_dim)
    return (w1, b1, w2, b2, w3, b3)


def reference_forward_f32(x, params):
    """Pure-f32 JAX reference (matches PyTorch math)."""
    w1, b1, w2, b2, w3, b3 = params
    h1 = jnp.maximum(x @ w1 + b1.reshape(1, -1), 0.0)
    h2 = jnp.maximum(h1 @ w2 + b2.reshape(1, -1), 0.0)
    return jax.nn.softmax(h2 @ w3 + b3.reshape(1, -1), axis=1)


def reference_forward_mixed(x, params):
    """Reference matching the kernel's dtype path (f32 fc1, bf16 fc2/fc3)."""
    w1, b1, w2, b2, w3, b3 = params

    def bdot(a, b):
        return jnp.dot(a.astype(jnp.bfloat16), b.astype(jnp.bfloat16),
                       preferred_element_type=jnp.float32)

    h1 = jnp.maximum(jnp.dot(x, w1) + b1.reshape(1, -1), 0.0)
    h2 = jnp.maximum(bdot(h1, w2) + b2.reshape(1, -1), 0.0)
    return jax.nn.softmax(bdot(h2, w3) + b3.reshape(1, -1), axis=1)


if __name__ == "__main__":
    # Shapes consistent with PolicyNet(state_dim, hidden_dim, action_dim)
    batch, state_dim, hidden_dim, action_dim = 2, 4, 32, 4

    key = jax.random.PRNGKey(0)
    k_x, k_p = jax.random.split(key)

    x = jax.random.normal(k_x, (batch, state_dim), jnp.float32)
    params = init_params(k_p, state_dim, hidden_dim, action_dim)

    # One-time weight preparation (hoisted out of the per-call forward path).
    prepared = jax.block_until_ready(prepare_params(params))

    out = jax.block_until_ready(
        policy_net_forward(x, prepared, action_dim=action_dim))
    out_f32 = out.astype(jnp.float32)

    ref_mixed = reference_forward_mixed(x, params)  # matches kernel dtype path
    ref_f32 = reference_forward_f32(x, params)      # exact PyTorch-style math

    assert out.shape == (batch, action_dim)
    assert out.dtype == jnp.bfloat16
    assert bool(jnp.all(jnp.isfinite(out_f32)))
    assert bool(jnp.all(out_f32 >= 0.0))
    # probabilities: rows sum to ~1 (exact divide; only bf16 output rounding)
    assert jnp.allclose(jnp.sum(out_f32, axis=1), 1.0, atol=2e-2)
    assert jnp.allclose(out_f32, ref_mixed, atol=2e-2, rtol=2e-2)
    assert jnp.allclose(out_f32, ref_f32, atol=4e-2, rtol=4e-2)

    print("KERNEL_OK")
</pallas_src>

<mosaic_0001>
module attributes {stable_mosaic.version = 11 : i64} {
  func.func @policy_net_kernel(%arg0: i32, %arg1: memref<16x4xf32, #tpu.memory_space<vmem>>, %arg2: memref<4x128xf32, #tpu.memory_space<vmem>>, %arg3: memref<1x128xf32, #tpu.memory_space<vmem>>, %arg4: memref<128x128xbf16, #tpu.memory_space<vmem>>, %arg5: memref<1x128xf32, #tpu.memory_space<vmem>>, %arg6: memref<128x128xbf16, #tpu.memory_space<vmem>>, %arg7: memref<1x128xf32, #tpu.memory_space<vmem>>, %arg8: memref<16x128xbf16, #tpu.memory_space<vmem>>) attributes {dimension_semantics = [#tpu.dimension_semantics<parallel>], iteration_bounds = array<i64: 1>, scalar_prefetch = 0 : i64, scratch_operands = 0 : i64, tpu.core_type = #tpu.core_type<tc>, window_params = [{transform_indices = @transform_0, window_bounds = array<i64: 16, 4>}, {pipeline_mode = #tpu.pipeline_mode<synchronous>, transform_indices = @transform_1, window_bounds = array<i64: 4, 128>}, {pipeline_mode = #tpu.pipeline_mode<synchronous>, transform_indices = @transform_2, window_bounds = array<i64: 1, 128>}, {pipeline_mode = #tpu.pipeline_mode<synchronous>, transform_indices = @transform_3, window_bounds = array<i64: 128, 128>}, {pipeline_mode = #tpu.pipeline_mode<synchronous>, transform_indices = @transform_4, window_bounds = array<i64: 1, 128>}, {pipeline_mode = #tpu.pipeline_mode<synchronous>, transform_indices = @transform_5, window_bounds = array<i64: 128, 128>}, {pipeline_mode = #tpu.pipeline_mode<synchronous>, transform_indices = @transform_6, window_bounds = array<i64: 1, 128>}, {transform_indices = @transform_7, window_bounds = array<i64: 16, 128>}]} {
    %c0 = arith.constant 0 : index
    %c0_0 = arith.constant 0 : index
    %0 = vector.load %arg1[%c0, %c0_0] : memref<16x4xf32, #tpu.memory_space<vmem>>, vector<16x4xf32>
    %c0_1 = arith.constant 0 : index
    %c0_2 = arith.constant 0 : index
    %1 = vector.load %arg2[%c0_1, %c0_2] : memref<4x128xf32, #tpu.memory_space<vmem>>, vector<4x128xf32>
    %cst = arith.constant dense<0.000000e+00> : vector<16x128xf32>
    %2 = tpu.matmul %0, %1, %cst {dimension_numbers = #tpu.dot_dimension_numbers<[1], [0], [0], [1], [0, 0, 1, 1], [], []>} : vector<16x4xf32>, vector<4x128xf32>, vector<16x128xf32> -> vector<16x128xf32>
    %c0_3 = arith.constant 0 : index
    %c0_4 = arith.constant 0 : index
    %3 = vector.load %arg3[%c0_3, %c0_4] : memref<1x128xf32, #tpu.memory_space<vmem>>, vector<1x128xf32>
    %4 = vector.broadcast %3 : vector<1x128xf32> to vector<16x128xf32>
    %5 = arith.addf %2, %4 : vector<16x128xf32>
    %cst_5 = arith.constant 0.000000e+00 : f32
    %6 = vector.broadcast %cst_5 : f32 to vector<16x128xf32>
    %7 = arith.maximumf %5, %6 : vector<16x128xf32>
    %8 = arith.truncf %7 : vector<16x128xf32> to vector<16x128xbf16>
    %c0_6 = arith.constant 0 : index
    %c0_7 = arith.constant 0 : index
    %9 = vector.load %arg4[%c0_6, %c0_7] : memref<128x128xbf16, #tpu.memory_space<vmem>>, vector<128x128xbf16>
    %cst_8 = arith.constant dense<0.000000e+00> : vector<16x128xf32>
    %10 = tpu.matmul %8, %9, %cst_8 {dimension_numbers = #tpu.dot_dimension_numbers<[1], [0], [0], [1], [0, 0, 1, 1], [], []>} : vector<16x128xbf16>, vector<128x128xbf16>, vector<16x128xf32> -> vector<16x128xf32>
    %c0_9 = arith.constant 0 : index
    %c0_10 = arith.constant 0 : index
    %11 = vector.load %arg5[%c0_9, %c0_10] : memref<1x128xf32, #tpu.memory_space<vmem>>, vector<1x128xf32>
    %12 = vector.broadcast %11 : vector<1x128xf32> to vector<16x128xf32>
    %13 = arith.addf %10, %12 : vector<16x128xf32>
    %cst_11 = arith.constant 0.000000e+00 : f32
    %14 = vector.broadcast %cst_11 : f32 to vector<16x128xf32>
    %15 = arith.maximumf %13, %14 : vector<16x128xf32>
    %16 = arith.truncf %15 : vector<16x128xf32> to vector<16x128xbf16>
    %c0_12 = arith.constant 0 : index
    %c0_13 = arith.constant 0 : index
    %17 = vector.load %arg6[%c0_12, %c0_13] : memref<128x128xbf16, #tpu.memory_space<vmem>>, vector<128x128xbf16>
    %cst_14 = arith.constant dense<0.000000e+00> : vector<16x128xf32>
    %18 = tpu.matmul %16, %17, %cst_14 {dimension_numbers = #tpu.dot_dimension_numbers<[1], [0], [0], [1], [0, 0, 1, 1], [], []>} : vector<16x128xbf16>, vector<128x128xbf16>, vector<16x128xf32> -> vector<16x128xf32>
    %c0_15 = arith.constant 0 : index
    %c0_16 = arith.constant 0 : index
    %19 = vector.load %arg7[%c0_15, %c0_16] : memref<1x128xf32, #tpu.memory_space<vmem>>, vector<1x128xf32>
    %20 = vector.broadcast %19 : vector<1x128xf32> to vector<16x128xf32>
    %21 = arith.addf %18, %20 : vector<16x128xf32>
    %cst_17 = arith.constant dense<0xFF800000> : vector<16xf32>
    %22 = vector.multi_reduction <maximumf>, %21, %cst_17 [1] : vector<16x128xf32> to vector<16xf32>
    %23 = vector.shape_cast %22 : vector<16xf32> to vector<16x1xf32>
    %24 = vector.broadcast %23 : vector<16x1xf32> to vector<16x128xf32>
    %25 = arith.subf %21, %24 : vector<16x128xf32>
    %26 = math.exp %25 : vector<16x128xf32>
    %cst_18 = arith.constant dense<0.000000e+00> : vector<16xf32>
    %27 = vector.multi_reduction <add>, %26, %cst_18 [1] : vector<16x128xf32> to vector<16xf32>
    %28 = vector.shape_cast %27 : vector<16xf32> to vector<16x1xf32>
    %29 = vector.broadcast %28 : vector<16x1xf32> to vector<16x128xf32>
    %30 = arith.divf %26, %29 : vector<16x128xf32>
    %31 = arith.truncf %30 : vector<16x128xf32> to vector<16x128xbf16>
    %c0_19 = arith.constant 0 : index
    %c0_20 = arith.constant 0 : index
    %32 = vector.load %arg8[%c0_19, %c0_20] : memref<16x128xbf16, #tpu.memory_space<vmem>>, vector<16x128xbf16>
    tpu.vector_store %arg8[%c0_19, %c0_20], %31 {strides = array<i32>} : memref<16x128xbf16, #tpu.memory_space<vmem>>, vector<16x128xbf16>,
    return
  }
  func.func @transform_0(%arg0: i32) -> (i32, i32) {
    %c0_i32 = arith.constant 0 : i32
    %c0_i32_0 = arith.constant 0 : i32
    return %arg0, %c0_i32 : i32, i32
  }
  func.func @transform_1(%arg0: i32) -> (i32, i32) {
    %c0_i32 = arith.constant 0 : i32
    %c0_i32_0 = arith.constant 0 : i32
    %c0_i32_1 = arith.constant 0 : i32
    return %c0_i32, %c0_i32_0 : i32, i32
  }
  func.func @transform_2(%arg0: i32) -> (i32, i32) {
    %c0_i32 = arith.constant 0 : i32
    %c0_i32_0 = arith.constant 0 : i32
    %c0_i32_1 = arith.constant 0 : i32
    return %c0_i32, %c0_i32_0 : i32, i32
  }
  func.func @transform_3(%arg0: i32) -> (i32, i32) {
    %c0_i32 = arith.constant 0 : i32
    %c0_i32_0 = arith.constant 0 : i32
    %c0_i32_1 = arith.constant 0 : i32
    return %c0_i32, %c0_i32_0 : i32, i32
  }
  func.func @transform_4(%arg0: i32) -> (i32, i32) {
    %c0_i32 = arith.constant 0 : i32
    %c0_i32_0 = arith.constant 0 : i32
    %c0_i32_1 = arith.constant 0 : i32
    return %c0_i32, %c0_i32_0 : i32, i32
  }
  func.func @transform_5(%arg0: i32) -> (i32, i32) {
    %c0_i32 = arith.constant 0 : i32
    %c0_i32_0 = arith.constant 0 : i32
    %c0_i32_1 = arith.constant 0 : i32
    return %c0_i32, %c0_i32_0 : i32, i32
  }
  func.func @transform_6(%arg0: i32) -> (i32, i32) {
    %c0_i32 = arith.constant 0 : i32
    %c0_i32_0 = arith.constant 0 : i32
    %c0_i32_1 = arith.constant 0 : i32
    return %c0_i32, %c0_i32_0 : i32, i32
  }
  func.func @transform_7(%arg0: i32) -> (i32, i32) {
    %c0_i32 = arith.constant 0 : i32
    %c0_i32_0 = arith.constant 0 : i32
    return %arg0, %c0_i32 : i32, i32
  }
}

</mosaic_0001>

<llo_original>
// kernel: policy_net_forward.1
$region0: #{policy_net_forward.1}
  #allocation0 [shape = 'u32[]', space=smem, size = 0x4, offset = 0x4, fixed_abs, tag = 'smem constant byte address 0x4 - core index']
  #allocation1 [shape = 'u32[144,128]{1,0:T(1,128)}', space=vmem, size = 0x12000, scoped, tag = 'internal scratch']
  %s0 = inlined_call_operand.vmem [shape: f32[16,4], index: 0, kind: input, shape index: {}]
  %s1 = inlined_call_operand.vmem [shape: f32[4,128], index: 1, kind: input, shape index: {}]
  %s2 = inlined_call_operand.vmem [shape: f32[1,128], index: 2, kind: input, shape index: {}]
  %s3 = inlined_call_operand.hbm [shape: bf16[128,128], index: 3, kind: input, shape index: {}]
  %s4 = inlined_call_operand.vmem [shape: f32[1,128], index: 4, kind: input, shape index: {}]
  %s5 = inlined_call_operand.hbm [shape: bf16[128,128], index: 5, kind: input, shape index: {}]
  %s6 = inlined_call_operand.vmem [shape: f32[1,128], index: 6, kind: input, shape index: {}]
  %s7 = inlined_call_operand.vmem [shape: bf16[16,128], index: 7, kind: output, shape index: {}]
  %s8 = sld [smem:[#allocation0]]
  $region46: #{policy_net_forward.1} parent=0
    _
  %s10 = ssub.s32 1, %s8
  %s11 = scalar_select 0, %s10, %s8
  $region1: #{policy_net_forward.1} parent=0
    #allocation2 [shape = 'u8[32768]{0}', space=vmem, size = 0x8000, scoped, tag = 'input window, operand 3, single buffered']
    #allocation3 [shape = 's32[1]{0}', space=sflag, size = 0x4, scoped, tag = 'scoped memory for policy_net_forward.1']
    #allocation4 [shape = 'u8[32768]{0}', space=vmem, size = 0x8000, scoped, tag = 'input window, operand 5, single buffered']
    #allocation5 [shape = 's32[1]{0}', space=sflag, size = 0x4, scoped, tag = 'scoped memory for policy_net_forward.1']
    %12 = vsyncpa [#allocation3], 0
    %13 = vsyncpa [#allocation5], 0
    // Predicated region
    $region2: #{policy_net_forward.1} parent=1 // pred_check
      _
    $region3: #{policy_net_forward.1} parent=1 // pred_check_branch
      %15 = sbr.rel (0) target = $region5
    $region4: #{policy_net_forward.1} parent=1 // pred_region
      _
    $region5: #{policy_net_forward.1} parent=1 // pred_fallthru
      _
    // Predicated region
    $region6: #{policy_net_forward.1} parent=1 // pred_check
      _
    $region7: #{policy_net_forward.1} parent=1 // pred_check_branch
      %17 = sbr.rel (0) target = $region9
    $region8: #{policy_net_forward.1} parent=1 // pred_region
      _
    $region9: #{policy_net_forward.1} parent=1 // pred_fallthru
      _
    // Predicated region
    $region10: #{policy_net_forward.1} parent=1 // pred_check
      _
    $region11: #{policy_net_forward.1} parent=1 // pred_check_branch
      %19 = sbr.rel (0) target = $region13
    $region12: #{policy_net_forward.1} parent=1 // pred_region
      _
    $region13: #{policy_net_forward.1} parent=1 // pred_fallthru
      _
    // Predicated region
    $region14: #{policy_net_forward.1} parent=1 // pred_check
      _
    $region15: #{policy_net_forward.1} parent=1 // pred_check_branch
      %21 = sbr.rel (0) target = $region17
    $region16: #{policy_net_forward.1} parent=1 // pred_region
      %s23 = ssub.s32 1024, 1024
      %24 = vsyncadd [#allocation3], %s23
      %s25 = sshll.u32 [#allocation2], 4
      %s26 = int_to_ptr.vmem [resolvable:$true] %s25
      %31 = dma.hbm_to_vmem [thread:$0]  %s3, 1024, %s26, [#allocation3], 64, 64, 4
    $region17: #{policy_net_forward.1} parent=1 // pred_fallthru
      _
    // Predicated region
    $region18: #{policy_net_forward.1} parent=1 // pred_check
      _
    $region19: #{policy_net_forward.1} parent=1 // pred_check_branch
      %33 = sbr.rel (0) target = $region21
    $region20: #{policy_net_forward.1} parent=1 // pred_region
      _
    $region21: #{policy_net_forward.1} parent=1 // pred_fallthru
      _
    // Predicated region
    $region22: #{policy_net_forward.1} parent=1 // pred_check
      _
    $region23: #{policy_net_forward.1} parent=1 // pred_check_branch
      %35 = sbr.rel (0) target = $region25
    $region24: #{policy_net_forward.1} parent=1 // pred_region
      %s37 = ssub.s32 1024, 1024
      %38 = vsyncadd [#allocation5], %s37
      %s39 = sshll.u32 [#allocation4], 4
      %s40 = int_to_ptr.vmem [resolvable:$true] %s39
      %45 = dma.hbm_to_vmem [thread:$0]  %s5, 1024, %s40, [#allocation5], 64, 64, 4
    $region25: #{policy_net_forward.1} parent=1 // pred_fallthru
      _
    // Predicated region
    $region26: #{policy_net_forward.1} parent=1 // pred_check
      _
    $region27: #{policy_net_forward.1} parent=1 // pred_check_branch
      %47 = sbr.rel (0) target = $region29
    $region28: #{policy_net_forward.1} parent=1 // pred_region
      _
    $region29: #{policy_net_forward.1} parent=1 // pred_fallthru
      _
    // Predicated region
    $region30: #{policy_net_forward.1} parent=1 // pred_check
      _
    $region31: #{policy_net_forward.1} parent=1 // pred_check_branch
      %49 = sbr.rel (0) target = $region33
    $region32: #{policy_net_forward.1} parent=1 // pred_region
      %50 = dma.done [#allocation3], 1024
    $region33: #{policy_net_forward.1} parent=1 // pred_fallthru
      _
    // Predicated region
    $region34: #{policy_net_forward.1} parent=1 // pred_check
      _
    $region35: #{policy_net_forward.1} parent=1 // pred_check_branch
      %52 = sbr.rel (0) target = $region37
    $region36: #{policy_net_forward.1} parent=1 // pred_region
      %53 = dma.done [#allocation5], 1024
    $region37: #{policy_net_forward.1} parent=1 // pred_fallthru
      _
    %v55 = vld [vmem:[%s0] sm:$0xff]
    %v56 = vld [vmem:[%s0 + $0x8] sm:$0xff]
    %v57 = vld [vmem:[%s1] sm:$0xf]
    %v58 = vld [vmem:[%s2] sm:$0x1]
    %v60 = vlaneseq
    %v61 = vshrl.u32 %v60, 7
    %v62 = vsub.s32 0, %v61
    %v63 = vrot.slane %v58, %v62
    %vm65 = vcmask 31744
    %v67 = vsel %vm65, %v55, 0
    %v70 = vsel %vm65, %v56, 0
    %vm72 = vcmask 1043456
    %v74 = vsel %vm72, %v57, 0
    %76 = vmatprep.subr.mxu0 0.0
    %77 = vmatpush1.msra.mxu0 %v74
    %78 = vmatprep.subr.mxu0 0.0
    %79 = vmatpush1.msra.mxu0 0.0
    %80 = vmatprep.subr.mxu0 0.0
    %81 = vmatpush1.msra.mxu0 0.0
    %82 = vmatprep.subr.mxu0 0.0
    %83 = vmatpush1.msra.mxu0 0.0
    %84 = vmatprep.subr.mxu0 0.0
    %85 = vmatpush1.msra.mxu0 0.0
    %86 = vmatprep.subr.mxu0 0.0
    %87 = vmatpush1.msra.mxu0 0.0
    %88 = vmatprep.subr.mxu0 0.0
    %89 = vmatpush1.msra.mxu0 0.0
    %90 = vmatprep.subr.mxu0 0.0
    %91 = vmatpush1.msra.mxu0 0.0
    %92 = vmatprep.subr.mxu0 0.0
    %93 = vmatpush1.msra.mxu0 0.0
    %94 = vmatprep.subr.mxu0 0.0
    %95 = vmatpush1.msra.mxu0 0.0
    %96 = vmatprep.subr.mxu0 0.0
    %97 = vmatpush1.msra.mxu0 0.0
    %98 = vmatprep.subr.mxu0 0.0
    %99 = vmatpush1.msra.mxu0 0.0
    %100 = vmatprep.subr.mxu0 0.0
    %101 = vmatpush1.msra.mxu0 0.0
    %102 = vmatprep.subr.mxu0 0.0
    %103 = vmatpush1.msra.mxu0 0.0
    %104 = vmatprep.subr.mxu0 0.0
    %105 = vmatpush1.msra.mxu0 0.0
    %106 = vmatprep.subr.mxu0 0.0
    %107 = vmatpush1.msra.mxu0 0.0
    %108 = vmatprep.subr.mxu0 0.0
    %109 = vmatpush1.msra.mxu0 0.0
    %110 = vmatprep.subr.mxu0 0.0
    %111 = vmatpush1.msra.mxu0 0.0
    %112 = vmatprep.subr.mxu0 0.0
    %113 = vmatpush1.msra.mxu0 0.0
    %114 = vmatprep.subr.mxu0 0.0
    %115 = vmatpush1.msra.mxu0 0.0
    %116 = vmatprep.subr.mxu0 0.0
    %117 = vmatpush1.msra.mxu0 0.0
    %118 = vmatprep.subr.mxu0 0.0
    %119 = vmatpush1.msra.mxu0 0.0
    %120 = vmatprep.subr.mxu0 0.0
    %121 = vmatpush1.msra.mxu0 0.0
    %122 = vmatprep.subr.mxu0 0.0
    %123 = vmatpush1.msra.mxu0 0.0
    %124 = vmatprep.subr.mxu0 0.0
    %125 = vmatpush1.msra.mxu0 0.0
    %126 = vmatprep.subr.mxu0 0.0
    %127 = vmatpush1.msra.mxu0 0.0
    %128 = vmatprep.subr.mxu0 0.0
    %129 = vmatpush1.msra.mxu0 0.0
    %130 = vmatprep.subr.mxu0 0.0
    %131 = vmatpush1.msra.mxu0 0.0
    %132 = vmatprep.subr.mxu0 0.0
    %133 = vmatpush1.msra.mxu0 0.0
    %134 = vmatprep.subr.mxu0 0.0
    %135 = vmatpush1.msra.mxu0 0.0
    %136 = vmatprep.subr.mxu0 0.0
    %137 = vmatpush1.msra.mxu0 0.0
    %138 = vmatprep.subr.mxu0 0.0
    %139 = vmatpush1.msra.mxu0 0.0
    %140 = vmatprep.mubr.f32.mxu0 0.0
    %141 = vmatmul.mubr.f32.gmra.mrb[0].mxu0 %v67
    %v142 = vpop.f32.mrb[0].mxu0
    %v143 = vadd.f32 %v63, %v142
    %v144 = vpop.f32.mrb[0].mxu0
    %145 = vmatprep.mubr.f32.mxu0 0.0
    %146 = vmatmul.mubr.f32.gmra.mrb[0].mxu0 %v70
    %v147 = vpop.f32.mrb[0].mxu0
    %v148 = vadd.f32 %v63, %v147
    %v149 = vpop.f32.mrb[0].mxu0
    %150 = vdwg.mxu0
    %v151 = vmax.f32 %v143, 0.0
    %v152 = vmax.f32 %v148, 0.0
    %v153 = vpack.c.bf16 %v152, %v151
    %v154 = vld [vmem:[#allocation2] sm:$0xf]
    %v155 = vld [vmem:[#allocation2 + $0x4] sm:$0xf]
    %v156 = vld [vmem:[#allocation2 + $0x8] sm:$0xf]
    %v157 = vld [vmem:[#allocation2 + $0xc] sm:$0xf]
    %v158 = vld [vmem:[#allocation2 + $0x10] sm:$0xf]
    %v159 = vld [vmem:[#allocation2 + $0x14] sm:$0xf]
    %v160 = vld [vmem:[#allocation2 + $0x18] sm:$0xf]
    %v161 = vld [vmem:[#allocation2 + $0x1c] sm:$0xf]
    %v162 = vld [vmem:[#allocation2 + $0x20] sm:$0xf]
    %v163 = vld [vmem:[#allocation2 + $0x24] sm:$0xf]
    %v164 = vld [vmem:[#allocation2 + $0x28] sm:$0xf]
    %v165 = vld [vmem:[#allocation2 + $0x2c] sm:$0xf]
    %v166 = vld [vmem:[#allocation2 + $0x30] sm:$0xf]
    %v167 = vld [vmem:[#allocation2 + $0x34] sm:$0xf]
    %v168 = vld [vmem:[#allocation2 + $0x38] sm:$0xf]
    %v169 = vld [vmem:[#allocation2 + $0x3c] sm:$0xf]
    %v170 = vld [vmem:[%s4] sm:$0x1]
    %v172 = vlaneseq
    %v173 = vshrl.u32 %v172, 7
    %v174 = vsub.s32 0, %v173
    %v175 = vrot.slane %v170, %v174
    %v193 = vunpack.c.l.b16 %v154
    %v194 = vunpack.c.l.b16 %v155
    %v195 = vunpack.c.l.b16 %v156
    %v196 = vunpack.c.l.b16 %v157
    %v197 = vunpack.c.l.b16 %v158
    %v198 = vunpack.c.l.b16 %v159
    %v199 = vunpack.c.l.b16 %v160
    %v200 = vunpack.c.l.b16 %v161
    %v201 = vunpack.c.l.b16 %v162
    %v202 = vunpack.c.l.b16 %v163
    %v203 = vunpack.c.l.b16 %v164
    %v204 = vunpack.c.l.b16 %v165
    %v205 = vunpack.c.l.b16 %v166
    %v206 = vunpack.c.l.b16 %v167
    %v207 = vunpack.c.l.b16 %v168
    %v208 = vunpack.c.l.b16 %v169
    %v209 = vpack.c.b16 %v194, %v193
    %v210 = vpack.c.b16 %v196, %v195
    %v211 = vpack.c.b16 %v198, %v197
    %v212 = vpack.c.b16 %v200, %v199
    %v213 = vpack.c.b16 %v202, %v201
    %v214 = vpack.c.b16 %v204, %v203
    %v215 = vpack.c.b16 %v206, %v205
    %v216 = vpack.c.b16 %v208, %v207
    %225 = vmatprep.subr.bf16.mxu0 0
    %226 = vmatpush1.bf16.msra.mxu0 %v209
    %227 = vmatprep.subr.bf16.mxu0 0
    %228 = vmatpush1.bf16.msra.mxu0 %v210
    %229 = vmatprep.subr.bf16.mxu0 0
    %230 = vmatpush1.bf16.msra.mxu0 %v211
    %231 = vmatprep.subr.bf16.mxu0 0
    %232 = vmatpush1.bf16.msra.mxu0 %v212
    %233 = vmatprep.subr.bf16.mxu0 0
    %234 = vmatpush1.bf16.msra.mxu0 %v213
    %235 = vmatprep.subr.bf16.mxu0 0
    %236 = vmatpush1.bf16.msra.mxu0 %v214
    %237 = vmatprep.subr.bf16.mxu0 0
    %238 = vmatpush1.bf16.msra.mxu0 %v215
    %239 = vmatprep.subr.bf16.mxu0 0
    %240 = vmatpush1.bf16.msra.mxu0 %v216
    %241 = vmatprep.subr.bf16.mxu0 0
    %242 = vmatpush1.bf16.msra.mxu0 0
    %243 = vmatprep.subr.bf16.mxu0 0
    %244 = vmatpush1.bf16.msra.mxu0 0
    %245 = vmatprep.subr.bf16.mxu0 0
    %246 = vmatpush1.bf16.msra.mxu0 0
    %247 = vmatprep.subr.bf16.mxu0 0
    %248 = vmatpush1.bf16.msra.mxu0 0
    %249 = vmatprep.subr.bf16.mxu0 0
    %250 = vmatpush1.bf16.msra.mxu0 0
    %251 = vmatprep.subr.bf16.mxu0 0
    %252 = vmatpush1.bf16.msra.mxu0 0
    %253 = vmatprep.subr.bf16.mxu0 0
    %254 = vmatpush1.bf16.msra.mxu0 0
    %255 = vmatprep.subr.bf16.mxu0 0
    %256 = vmatpush1.bf16.msra.mxu0 0
    %257 = vmatprep.mubr.bf16.mxu0 0
    %258 = vmatmul.mubr.bf16.gmra.mrb[0].mxu0 %v153
    %v259 = vpop.f32.mrb[0].mxu0
    %v260 = vadd.f32 %v175, %v259
    %v261 = vpop.f32.mrb[0].mxu0
    %v262 = vpop.f32.mrb[0].mxu0
    %v263 = vadd.f32 %v175, %v262
    %v264 = vpop.f32.mrb[0].mxu0
    %265 = vdwg.mxu0
    %v266 = vmax.f32 %v260, 0.0
    %v267 = vmax.f32 %v263, 0.0
    %v268 = vpack.c.bf16 %v267, %v266
    %v269 = vld [vmem:[#allocation4] sm:$0xf]
    %v270 = vld [vmem:[#allocation4 + $0x4] sm:$0xf]
    %v271 = vld [vmem:[#allocation4 + $0x8] sm:$0xf]
    %v272 = vld [vmem:[#allocation4 + $0xc] sm:$0xf]
    %v273 = vld [vmem:[#allocation4 + $0x10] sm:$0xf]
    %v274 = vld [vmem:[#allocation4 + $0x14] sm:$0xf]
    %v275 = vld [vmem:[#allocation4 + $0x18] sm:$0xf]
    %v276 = vld [vmem:[#allocation4 + $0x1c] sm:$0xf]
    %v277 = vld [vmem:[#allocation4 + $0x20] sm:$0xf]
    %v278 = vld [vmem:[#allocation4 + $0x24] sm:$0xf]
    %v279 = vld [vmem:[#allocation4 + $0x28] sm:$0xf]
    %v280 = vld [vmem:[#allocation4 + $0x2c] sm:$0xf]
    %v281 = vld [vmem:[#allocation4 + $0x30] sm:$0xf]
    %v282 = vld [vmem:[#allocation4 + $0x34] sm:$0xf]
    %v283 = vld [vmem:[#allocation4 + $0x38] sm:$0xf]
    %v284 = vld [vmem:[#allocation4 + $0x3c] sm:$0xf]
    %v285 = vld [vmem:[%s6] sm:$0x1]
    %v287 = vlaneseq
    %v288 = vshrl.u32 %v287, 7
    %v289 = vsub.s32 0, %v288
    %v290 = vrot.slane %v285, %v289
    %v308 = vunpack.c.l.b16 %v269
    %v309 = vunpack.c.l.b16 %v270
    %v310 = vunpack.c.l.b16 %v271
    %v311 = vunpack.c.l.b16 %v272
    %v312 = vunpack.c.l.b16 %v273
    %v313 = vunpack.c.l.b16 %v274
    %v314 = vunpack.c.l.b16 %v275
    %v315 = vunpack.c.l.b16 %v276
    %v316 = vunpack.c.l.b16 %v277
    %v317 = vunpack.c.l.b16 %v278
    %v318 = vunpack.c.l.b16 %v279
    %v319 = vunpack.c.l.b16 %v280
    %v320 = vunpack.c.l.b16 %v281
    %v321 = vunpack.c.l.b16 %v282
    %v322 = vunpack.c.l.b16 %v283
    %v323 = vunpack.c.l.b16 %v284
    %v324 = vpack.c.b16 %v309, %v308
    %v325 = vpack.c.b16 %v311, %v310
    %v326 = vpack.c.b16 %v313, %v312
    %v327 = vpack.c.b16 %v315, %v314
    %v328 = vpack.c.b16 %v317, %v316
    %v329 = vpack.c.b16 %v319, %v318
    %v330 = vpack.c.b16 %v321, %v320
    %v331 = vpack.c.b16 %v323, %v322
    %340 = vmatprep.subr.bf16.mxu0 0
    %341 = vmatpush1.bf16.msra.mxu0 %v324
    %342 = vmatprep.subr.bf16.mxu0 0
    %343 = vmatpush1.bf16.msra.mxu0 %v325
    %344 = vmatprep.subr.bf16.mxu0 0
    %345 = vmatpush1.bf16.msra.mxu0 %v326
    %346 = vmatprep.subr.bf16.mxu0 0
    %347 = vmatpush1.bf16.msra.mxu0 %v327
    %348 = vmatprep.subr.bf16.mxu0 0
    %349 = vmatpush1.bf16.msra.mxu0 %v328
    %350 = vmatprep.subr.bf16.mxu0 0
    %351 = vmatpush1.bf16.msra.mxu0 %v329
    %352 = vmatprep.subr.bf16.mxu0 0
    %353 = vmatpush1.bf16.msra.mxu0 %v330
    %354 = vmatprep.subr.bf16.mxu0 0
    %355 = vmatpush1.bf16.msra.mxu0 %v331
    %356 = vmatprep.subr.bf16.mxu0 0
    %357 = vmatpush1.bf16.msra.mxu0 0
    %358 = vmatprep.subr.bf16.mxu0 0
    %359 = vmatpush1.bf16.msra.mxu0 0
    %360 = vmatprep.subr.bf16.mxu0 0
    %361 = vmatpush1.bf16.msra.mxu0 0
    %362 = vmatprep.subr.bf16.mxu0 0
    %363 = vmatpush1.bf16.msra.mxu0 0
    %364 = vmatprep.subr.bf16.mxu0 0
    %365 = vmatpush1.bf16.msra.mxu0 0
    %366 = vmatprep.subr.bf16.mxu0 0
    %367 = vmatpush1.bf16.msra.mxu0 0
    %368 = vmatprep.subr.bf16.mxu0 0
    %369 = vmatpush1.bf16.msra.mxu0 0
    %370 = vmatprep.subr.bf16.mxu0 0
    %371 = vmatpush1.bf16.msra.mxu0 0
    %372 = vmatprep.mubr.bf16.mxu0 0
    %373 = vmatmul.mubr.bf16.gmra.mrb[0].mxu0 %v268
    %v374 = vpop.f32.mrb[0].mxu0
    %v375 = vadd.f32 %v290, %v374
    %v376 = vpop.f32.mrb[0].mxu0
    %v377 = vpop.f32.mrb[0].mxu0
    %v378 = vadd.f32 %v290, %v377
    %v379 = vpop.f32.mrb[0].mxu0
    %380 = vdwg.mxu0
    %381 = vmax.xlane.f32.xlu0 %v375
    %v382 = vpop.xlane.xlu0 %381
    %383 = vmax.xlane.f32.xlu0 %v378
    %v384 = vpop.xlane.xlu0 %383
    %v385 = vsub.f32 %v375, %v382
    %v386 = vsub.f32 %v378, %v384
    %v387 = vmul.f32 %v385, 1.442695
    %v388 = vpow.pop %v387
    %v389 = vmul.f32 %v386, 1.442695
    %v390 = vpow.pop %v389
    %391 = vadd.xlane.f32.xlu0 %v388
    %v392 = vpop.xlane.xlu0 %391
    %393 = vadd.xlane.f32.xlu0 %v390
    %v394 = vpop.xlane.xlu0 %393
    %v395 = vrcp.pop %v392
    %v396 = vmul.f32 %v388, %v395
    %v397 = vrcp.pop %v394
    %v398 = vmul.f32 %v390, %v397
    %v399 = vpack.c.bf16 %v398, %v396
    %v401 = vunpack.c.l.b16 %v399
    %v402 = vunpack.c.h.b16 %v399
    %v403 = vpack.c.b16 %v401, %v401
    %v404 = vpack.c.b16 %v402, %v402
    %407 = vst [vmem:[%s7] sm:$0xf] %v403
    %408 = vst [vmem:[%s7 + $0x4] sm:$0xf] %v404
    // Predicated region
    $region38: #{policy_net_forward.1} parent=1 // pred_check
      _
    $region39: #{policy_net_forward.1} parent=1 // pred_check_branch
      %410 = sbr.rel (0) target = $region41
    $region40: #{policy_net_forward.1} parent=1 // pred_region
      _
    $region41: #{policy_net_forward.1} parent=1 // pred_fallthru
      _
    // Predicated region
    $region42: #{policy_net_forward.1} parent=1 // pred_check
      _
    $region43: #{policy_net_forward.1} parent=1 // pred_check_branch
      %412 = sbr.rel (0) target = $region45
    $region44: #{policy_net_forward.1} parent=1 // pred_region
      _
    $region45: #{policy_net_forward.1} parent=1 // pred_fallthru
      _
    %413 = vsyncpa [#allocation3], 1
    %414 = vsyncpa [#allocation5], 1

</llo_original>
